<compile_context>
chip_gen: v6e
topology: v6e:2x2x1
jax: 0.10.0
libtpu: 0.0.40
codegen_flags: <defaults>
</compile_context>

<pallas_src>
import jax
import jax.numpy as jnp
import numpy as np
from jax.experimental import pallas as pl
from jax.experimental.pallas import tpu as pltpu


def _round_up(x, m):
    return ((x + m - 1) // m) * m


# ----------------------------------------------------------------------------
# Pallas kernel: fused 3-layer MLP (Linear + folded BN + ReLU) on an M row-tile
# ----------------------------------------------------------------------------
def _landmark_mlp_kernel(x_ref, w1_ref, b1_ref, w2_ref, b2_ref,
                         w3_ref, b3_ref, o_ref):
    # Layer 1: Linear(11, 128) + BN(128) + ReLU   (BN folded into w1 / b1).
    h = jnp.dot(x_ref[...], w1_ref[...], preferred_element_type=jnp.float32)
    h = jnp.maximum(h + b1_ref[...], 0.0)                 # f32 epilogue
    # Layer 2: Linear(128, 16) + BN(16) + ReLU.
    h = jnp.dot(h.astype(w2_ref.dtype), w2_ref[...],
                preferred_element_type=jnp.float32)
    h = jnp.maximum(h + b2_ref[...], 0.0)
    # Layer 3: Linear(16, 16) + BN(16) + ReLU.
    h = jnp.dot(h.astype(w3_ref.dtype), w3_ref[...],
                preferred_element_type=jnp.float32)
    o_ref[...] = jnp.maximum(h + b3_ref[...], 0.0).astype(o_ref.dtype)


def landmark_forward(params, x, *, tm=2048, target_steps=8,
                     vmem_limit_bytes=32 * 1024 * 1024, jax_fallback_rows=0):
    """Fused 3-layer MLP forward.  x: (B, 11) -> (B, 16) float32."""
    w1, b1, w2, b2, w3, b3 = params
    B, fin = x.shape
    fout = w3.shape[1]

    if B == 0:
        return jnp.zeros((0, fout), jnp.float32)
    if jax_fallback_rows and B <= jax_fallback_rows:
        # Tiny-batch latency regime: a fused XLA dot beats a custom-call launch.
        return landmark_forward_ref(params, x)

    # Cast the activations to the weight dtype (bf16 weights -> bf16 HBM reads).
    x = x.astype(w1.dtype)

    # Pad only tiny batches (< 8 rows) up to one sublane group.  Larger batches
    # are never copied: the grid uses pl.cdiv and Pallas clips the boundary DMAs
    # of the ragged last tile (its out-of-bounds output rows are dropped).
    b_rows = B
    if B < 8:
        x = jnp.pad(x, ((0, 8 - B), (0, 0)))
        b_rows = 8

    # Row-tile choice: big enough to amortize the ~0.35us/step pipeline overhead
    # (512+ rows is ~85% of HBM roofline), small enough to (a) keep >=
    # target_steps grid steps so the 'parallel' axis can be sharded across v7x's
    # two TensorCores and (b) stay well inside the explicit VMEM limit on v5e.
    tm8 = _round_up(max(tm, 8), 8)
    block_m = max(8, min(tm8, _round_up(pl.cdiv(b_rows, target_steps), 8)))
    grid_m = pl.cdiv(b_rows, block_m)

    weight_bytes = sum(int(a.size) * a.dtype.itemsize
                       for a in (w1, b1, w2, b2, w3, b3))
    cost = pl.CostEstimate(
        flops=2 * b_rows * (fin * w1.shape[1]
                            + w2.shape[0] * w2.shape[1]
                            + w3.shape[0] * w3.shape[1]),
        transcendentals=0,
        bytes_accessed=b_rows * (fin * x.dtype.itemsize + fout * 4)
                       + weight_bytes,
    )

    out = pl.pallas_call(
        _landmark_mlp_kernel,
        out_shape=jax.ShapeDtypeStruct((b_rows, fout), jnp.float32),
        grid_spec=pltpu.PrefetchScalarGridSpec(
            num_scalar_prefetch=0,
            grid=(grid_m,),
            in_specs=[
                pl.BlockSpec((block_m, fin), lambda i: (i, 0)),   # x row-tile
                pl.BlockSpec(w1.shape, lambda i: (0, 0)),         # weights and
                pl.BlockSpec(b1.shape, lambda i: (0, 0)),         # biases stay
                pl.BlockSpec(w2.shape, lambda i: (0, 0)),         # resident
                pl.BlockSpec(b2.shape, lambda i: (0, 0)),
                pl.BlockSpec(w3.shape, lambda i: (0, 0)),
                pl.BlockSpec(b3.shape, lambda i: (0, 0)),
            ],
            out_specs=pl.BlockSpec((block_m, fout), lambda i: (i, 0)),
        ),
        compiler_params=pltpu.CompilerParams(
            dimension_semantics=("parallel",),      # megacore-shardable on v7x
            vmem_limit_bytes=vmem_limit_bytes),     # v5e scoped default is 16MiB
        cost_estimate=cost,
    )(x, w1, b1, w2, b2, w3, b3)

    if b_rows != B:
        out = out[:B]
    return out


# ----------------------------------------------------------------------------
# Deterministic synthetic parameters (eval-mode BN folded in at build time)
# ----------------------------------------------------------------------------
def _bn_stats(key, n, eps=1e-5):
    k1, k2, k3, k4 = jax.random.split(key, 4)
    gamma = 1.0 + 0.1 * jax.random.normal(k1, (n,), jnp.float32)
    beta = 0.1 * jax.random.normal(k2, (n,), jnp.float32)
    mean = 0.1 * jax.random.normal(k3, (n,), jnp.float32)
    var = 1.0 + 0.1 * jnp.abs(jax.random.normal(k4, (n,), jnp.float32))
    scale = gamma / jnp.sqrt(var + eps)
    return scale, beta, mean


def make_params(key, dtype=jnp.float32):
    """Synthetic Linear(11,128)/(128,16)/(16,16) weights with eval-mode
    BatchNorm folded in.  Weights stored in `dtype` (bfloat16 on v6e/v7x halves
    HBM read traffic); biases stay float32 so the in-kernel epilogue runs on the
    f32 VPU path everywhere (v5e has no bf16 VPU)."""
    cfg = [(11, 128), (128, 16), (16, 16)]
    keys = jax.random.split(key, 3 * len(cfg))
    params = []
    for li, (fin, fout) in enumerate(cfg):
        kw, kb, kbn = keys[3 * li], keys[3 * li + 1], keys[3 * li + 2]
        w = 0.05 * jax.random.normal(kw, (fout, fin), jnp.float32)  # torch layout
        b = 0.05 * jax.random.normal(kb, (fout,), jnp.float32)
        scale, beta, mean = _bn_stats(kbn, fout)
        # BN(x @ w.T + b) == x @ (w.T * scale) + ((b - mean) * scale + beta)
        w_mat = (w.T * scale[None, :]).astype(dtype)                  # (fin, fout)
        bias = ((b - mean) * scale + beta).reshape(1, fout).astype(jnp.float32)
        params.extend([w_mat, bias])
    return tuple(params)


# ----------------------------------------------------------------------------
# Pure-JAX reference (sanity check for the fused kernel)
# ----------------------------------------------------------------------------
def landmark_forward_ref(params, x):
    w1, b1, w2, b2, w3, b3 = params
    xf = x.astype(jnp.float32)
    h = jnp.maximum(xf @ w1.astype(jnp.float32) + b1, 0.0)
    h = jnp.maximum(h @ w2.astype(jnp.float32) + b2, 0.0)
    return jnp.maximum(h @ w3.astype(jnp.float32) + b3, 0.0)


if __name__ == "__main__":
    key = jax.random.PRNGKey(0)
    kp, kx1, kx2 = jax.random.split(key, 3)

    fwd = jax.jit(landmark_forward)

    # 1) Small-batch f32 correctness check (B=2, like the module's usage).
    params = make_params(kp)
    x_small = jax.random.normal(kx1, (2, 11), jnp.float32)
    out_small = jax.block_until_ready(fwd(params, x_small))
    assert out_small.shape == (2, 16), out_small.shape
    np.testing.assert_allclose(np.asarray(out_small),
                               np.asarray(landmark_forward_ref(params, x_small)),
                               rtol=1e-2, atol=1e-2)

    # 2) Multi-step grid (8 row-tiles of 128): exercises pipelining / megacore.
    x_big = jax.random.normal(kx2, (1024, 11), jnp.float32)
    out_big = jax.block_until_ready(fwd(params, x_big))
    np.testing.assert_allclose(np.asarray(out_big),
                               np.asarray(landmark_forward_ref(params, x_big)),
                               rtol=1e-2, atol=1e-2)

    # 3) bf16 weights/activations (bandwidth path for v6e/v7x); f32 accumulate
    #    and epilogue inside the kernel, f32 output.
    params_bf16 = make_params(kp, dtype=jnp.bfloat16)
    out_bf16 = jax.block_until_ready(fwd(params_bf16, x_big))
    np.testing.assert_allclose(np.asarray(out_bf16),
                               np.asarray(landmark_forward_ref(params_bf16, x_big)),
                               rtol=5e-2, atol=2e-2)

    print("KERNEL_OK")
</pallas_src>

<mosaic_0001>
module attributes {stable_mosaic.version = 11 : i64} {
  func.func @_landmark_mlp_kernel(%arg0: i32, %arg1: memref<8x11xf32, #tpu.memory_space<vmem>>, %arg2: memref<11x128xf32, #tpu.memory_space<vmem>>, %arg3: memref<1x128xf32, #tpu.memory_space<vmem>>, %arg4: memref<128x16xf32, #tpu.memory_space<vmem>>, %arg5: memref<1x16xf32, #tpu.memory_space<vmem>>, %arg6: memref<16x16xf32, #tpu.memory_space<vmem>>, %arg7: memref<1x16xf32, #tpu.memory_space<vmem>>, %arg8: memref<8x16xf32, #tpu.memory_space<vmem>>) attributes {dimension_semantics = [#tpu.dimension_semantics<parallel>], iteration_bounds = array<i64: 1>, scalar_prefetch = 0 : i64, scratch_operands = 0 : i64, tpu.core_type = #tpu.core_type<tc>, window_params = [{transform_indices = @transform_0, window_bounds = array<i64: 8, 11>}, {pipeline_mode = #tpu.pipeline_mode<synchronous>, transform_indices = @transform_1, window_bounds = array<i64: 11, 128>}, {pipeline_mode = #tpu.pipeline_mode<synchronous>, transform_indices = @transform_2, window_bounds = array<i64: 1, 128>}, {pipeline_mode = #tpu.pipeline_mode<synchronous>, transform_indices = @transform_3, window_bounds = array<i64: 128, 16>}, {pipeline_mode = #tpu.pipeline_mode<synchronous>, transform_indices = @transform_4, window_bounds = array<i64: 1, 16>}, {pipeline_mode = #tpu.pipeline_mode<synchronous>, transform_indices = @transform_5, window_bounds = array<i64: 16, 16>}, {pipeline_mode = #tpu.pipeline_mode<synchronous>, transform_indices = @transform_6, window_bounds = array<i64: 1, 16>}, {transform_indices = @transform_7, window_bounds = array<i64: 8, 16>}]} {
    %c0 = arith.constant 0 : index
    %c0_0 = arith.constant 0 : index
    %0 = vector.load %arg1[%c0, %c0_0] : memref<8x11xf32, #tpu.memory_space<vmem>>, vector<8x11xf32>
    %c0_1 = arith.constant 0 : index
    %c0_2 = arith.constant 0 : index
    %1 = vector.load %arg2[%c0_1, %c0_2] : memref<11x128xf32, #tpu.memory_space<vmem>>, vector<11x128xf32>
    %cst = arith.constant dense<0.000000e+00> : vector<8x128xf32>
    %2 = tpu.matmul %0, %1, %cst {dimension_numbers = #tpu.dot_dimension_numbers<[1], [0], [0], [1], [0, 0, 1, 1], [], []>} : vector<8x11xf32>, vector<11x128xf32>, vector<8x128xf32> -> vector<8x128xf32>
    %c0_3 = arith.constant 0 : index
    %c0_4 = arith.constant 0 : index
    %3 = vector.load %arg3[%c0_3, %c0_4] : memref<1x128xf32, #tpu.memory_space<vmem>>, vector<1x128xf32>
    %4 = vector.broadcast %3 : vector<1x128xf32> to vector<8x128xf32>
    %5 = arith.addf %2, %4 : vector<8x128xf32>
    %cst_5 = arith.constant 0.000000e+00 : f32
    %6 = vector.broadcast %cst_5 : f32 to vector<8x128xf32>
    %7 = arith.maximumf %5, %6 : vector<8x128xf32>
    %c0_6 = arith.constant 0 : index
    %c0_7 = arith.constant 0 : index
    %8 = vector.load %arg4[%c0_6, %c0_7] : memref<128x16xf32, #tpu.memory_space<vmem>>, vector<128x16xf32>
    %cst_8 = arith.constant dense<0.000000e+00> : vector<8x16xf32>
    %9 = tpu.matmul %7, %8, %cst_8 {dimension_numbers = #tpu.dot_dimension_numbers<[1], [0], [0], [1], [0, 0, 1, 1], [], []>} : vector<8x128xf32>, vector<128x16xf32>, vector<8x16xf32> -> vector<8x16xf32>
    %c0_9 = arith.constant 0 : index
    %c0_10 = arith.constant 0 : index
    %10 = vector.load %arg5[%c0_9, %c0_10] : memref<1x16xf32, #tpu.memory_space<vmem>>, vector<1x16xf32>
    %11 = vector.broadcast %10 : vector<1x16xf32> to vector<8x16xf32>
    %12 = arith.addf %9, %11 : vector<8x16xf32>
    %cst_11 = arith.constant 0.000000e+00 : f32
    %13 = vector.broadcast %cst_11 : f32 to vector<8x16xf32>
    %14 = arith.maximumf %12, %13 : vector<8x16xf32>
    %c0_12 = arith.constant 0 : index
    %c0_13 = arith.constant 0 : index
    %15 = vector.load %arg6[%c0_12, %c0_13] : memref<16x16xf32, #tpu.memory_space<vmem>>, vector<16x16xf32>
    %cst_14 = arith.constant dense<0.000000e+00> : vector<8x16xf32>
    %16 = tpu.matmul %14, %15, %cst_14 {dimension_numbers = #tpu.dot_dimension_numbers<[1], [0], [0], [1], [0, 0, 1, 1], [], []>} : vector<8x16xf32>, vector<16x16xf32>, vector<8x16xf32> -> vector<8x16xf32>
    %c0_15 = arith.constant 0 : index
    %c0_16 = arith.constant 0 : index
    %17 = vector.load %arg7[%c0_15, %c0_16] : memref<1x16xf32, #tpu.memory_space<vmem>>, vector<1x16xf32>
    %18 = vector.broadcast %17 : vector<1x16xf32> to vector<8x16xf32>
    %19 = arith.addf %16, %18 : vector<8x16xf32>
    %cst_17 = arith.constant 0.000000e+00 : f32
    %20 = vector.broadcast %cst_17 : f32 to vector<8x16xf32>
    %21 = arith.maximumf %19, %20 : vector<8x16xf32>
    %c0_18 = arith.constant 0 : index
    %c0_19 = arith.constant 0 : index
    %22 = vector.load %arg8[%c0_18, %c0_19] : memref<8x16xf32, #tpu.memory_space<vmem>>, vector<8x16xf32>
    tpu.vector_store %arg8[%c0_18, %c0_19], %21 {strides = array<i32>} : memref<8x16xf32, #tpu.memory_space<vmem>>, vector<8x16xf32>,
    return
  }
  func.func @transform_0(%arg0: i32) -> (i32, i32) {
    %c0_i32 = arith.constant 0 : i32
    %c0_i32_0 = arith.constant 0 : i32
    return %arg0, %c0_i32 : i32, i32
  }
  func.func @transform_1(%arg0: i32) -> (i32, i32) {
    %c0_i32 = arith.constant 0 : i32
    %c0_i32_0 = arith.constant 0 : i32
    %c0_i32_1 = arith.constant 0 : i32
    return %c0_i32, %c0_i32_0 : i32, i32
  }
  func.func @transform_2(%arg0: i32) -> (i32, i32) {
    %c0_i32 = arith.constant 0 : i32
    %c0_i32_0 = arith.constant 0 : i32
    %c0_i32_1 = arith.constant 0 : i32
    return %c0_i32, %c0_i32_0 : i32, i32
  }
  func.func @transform_3(%arg0: i32) -> (i32, i32) {
    %c0_i32 = arith.constant 0 : i32
    %c0_i32_0 = arith.constant 0 : i32
    %c0_i32_1 = arith.constant 0 : i32
    return %c0_i32, %c0_i32_0 : i32, i32
  }
  func.func @transform_4(%arg0: i32) -> (i32, i32) {
    %c0_i32 = arith.constant 0 : i32
    %c0_i32_0 = arith.constant 0 : i32
    %c0_i32_1 = arith.constant 0 : i32
    return %c0_i32, %c0_i32_0 : i32, i32
  }
  func.func @transform_5(%arg0: i32) -> (i32, i32) {
    %c0_i32 = arith.constant 0 : i32
    %c0_i32_0 = arith.constant 0 : i32
    %c0_i32_1 = arith.constant 0 : i32
    return %c0_i32, %c0_i32_0 : i32, i32
  }
  func.func @transform_6(%arg0: i32) -> (i32, i32) {
    %c0_i32 = arith.constant 0 : i32
    %c0_i32_0 = arith.constant 0 : i32
    %c0_i32_1 = arith.constant 0 : i32
    return %c0_i32, %c0_i32_0 : i32, i32
  }
  func.func @transform_7(%arg0: i32) -> (i32, i32) {
    %c0_i32 = arith.constant 0 : i32
    %c0_i32_0 = arith.constant 0 : i32
    return %arg0, %c0_i32 : i32, i32
  }
}

</mosaic_0001>

<llo_original>
// kernel: landmark_forward.1
$region0: #{landmark_forward.1}
  #allocation0 [shape = 'u32[]', space=smem, size = 0x4, offset = 0x4, fixed_abs, tag = 'smem constant byte address 0x4 - core index']
  #allocation1 [shape = 'u32[144,128]{1,0:T(1,128)}', space=vmem, size = 0x12000, scoped, tag = 'internal scratch']
  %s0 = inlined_call_operand.vmem [shape: f32[8,11], index: 0, kind: input, shape index: {}]
  %s1 = inlined_call_operand.vmem [shape: f32[11,128], index: 1, kind: input, shape index: {}]
  %s2 = inlined_call_operand.vmem [shape: f32[1,128], index: 2, kind: input, shape index: {}]
  %s3 = inlined_call_operand.vmem [shape: f32[128,16], index: 3, kind: input, shape index: {}]
  %s4 = inlined_call_operand.vmem [shape: f32[1,16], index: 4, kind: input, shape index: {}]
  %s5 = inlined_call_operand.vmem [shape: f32[16,16], index: 5, kind: input, shape index: {}]
  %s6 = inlined_call_operand.vmem [shape: f32[1,16], index: 6, kind: input, shape index: {}]
  %s7 = inlined_call_operand.vmem [shape: f32[8,16], index: 7, kind: output, shape index: {}]
  %s8 = sld [smem:[#allocation0]]
  $region38: #{landmark_forward.1} parent=0
    _
  %s10 = ssub.s32 1, %s8
  %s11 = scalar_select 0, %s10, %s8
  // Predicated region
  $region2: #{landmark_forward.1} parent=0 // pred_check
    _
  $region3: #{landmark_forward.1} parent=0 // pred_check_branch
    %13 = sbr.rel (0) target = $region5
  $region4: #{landmark_forward.1} parent=0 // pred_region
    _
  $region5: #{landmark_forward.1} parent=0 // pred_fallthru
    _
  // Predicated region
  $region6: #{landmark_forward.1} parent=0 // pred_check
    _
  $region7: #{landmark_forward.1} parent=0 // pred_check_branch
    %15 = sbr.rel (0) target = $region9
  $region8: #{landmark_forward.1} parent=0 // pred_region
    _
  $region9: #{landmark_forward.1} parent=0 // pred_fallthru
    _
  // Predicated region
  $region10: #{landmark_forward.1} parent=0 // pred_check
    _
  $region11: #{landmark_forward.1} parent=0 // pred_check_branch
    %17 = sbr.rel (0) target = $region13
  $region12: #{landmark_forward.1} parent=0 // pred_region
    _
  $region13: #{landmark_forward.1} parent=0 // pred_fallthru
    _
  // Predicated region
  $region14: #{landmark_forward.1} parent=0 // pred_check
    _
  $region15: #{landmark_forward.1} parent=0 // pred_check_branch
    %19 = sbr.rel (0) target = $region17
  $region16: #{landmark_forward.1} parent=0 // pred_region
    _
  $region17: #{landmark_forward.1} parent=0 // pred_fallthru
    _
  // Predicated region
  $region18: #{landmark_forward.1} parent=0 // pred_check
    _
  $region19: #{landmark_forward.1} parent=0 // pred_check_branch
    %21 = sbr.rel (0) target = $region21
  $region20: #{landmark_forward.1} parent=0 // pred_region
    _
  $region21: #{landmark_forward.1} parent=0 // pred_fallthru
    _
  // Predicated region
  $region22: #{landmark_forward.1} parent=0 // pred_check
    _
  $region23: #{landmark_forward.1} parent=0 // pred_check_branch
    %23 = sbr.rel (0) target = $region25
  $region24: #{landmark_forward.1} parent=0 // pred_region
    _
  $region25: #{landmark_forward.1} parent=0 // pred_fallthru
    _
  // Predicated region
  $region26: #{landmark_forward.1} parent=0 // pred_check
    _
  $region27: #{landmark_forward.1} parent=0 // pred_check_branch
    %25 = sbr.rel (0) target = $region29
  $region28: #{landmark_forward.1} parent=0 // pred_region
    _
  $region29: #{landmark_forward.1} parent=0 // pred_fallthru
    _
  %v26 = vld [vmem:[%s0] sm:$0xff]
  %v27 = vld [vmem:[%s1] sm:$0xff]
  %v28 = vld [vmem:[%s1 + $0x8] sm:$0x7]
  %v29 = vld [vmem:[%s2] sm:$0x1]
  %v31 = vlaneseq
  %v32 = vshrl.u32 %v31, 7
  %v33 = vsub.s32 0, %v32
  %v34 = vrot.slane %v29, %v33
  %vm36 = vcmask 89088
  %v38 = vsel %vm36, %v26, 0
  %vm40 = vcmask 1042432
  %v42 = vsel %vm40, %v28, 0
  %44 = vmatprep.subr.mxu0 0.0
  %45 = vmatpush1.msra.mxu0 0.0
  %46 = vmatprep.subr.mxu0 0.0
  %47 = vmatpush1.msra.mxu0 0.0
  %48 = vmatprep.subr.mxu0 0.0
  %49 = vmatpush1.msra.mxu0 0.0
  %50 = vmatprep.subr.mxu0 0.0
  %51 = vmatpush1.msra.mxu0 0.0
  %52 = vmatprep.subr.mxu0 0.0
  %53 = vmatpush1.msra.mxu0 0.0
  %54 = vmatprep.subr.mxu0 0.0
  %55 = vmatpush1.msra.mxu0 0.0
  %56 = vmatprep.subr.mxu0 0.0
  %57 = vmatpush1.msra.mxu0 0.0
  %58 = vmatprep.subr.mxu0 0.0
  %59 = vmatpush1.msra.mxu0 0.0
  %60 = vmatprep.subr.mxu0 0.0
  %61 = vmatpush1.msra.mxu0 0.0
  %62 = vmatprep.subr.mxu0 0.0
  %63 = vmatpush1.msra.mxu0 0.0
  %64 = vmatprep.subr.mxu0 0.0
  %65 = vmatpush1.msra.mxu0 0.0
  %66 = vmatprep.subr.mxu0 0.0
  %67 = vmatpush1.msra.mxu0 0.0
  %68 = vmatprep.subr.mxu0 0.0
  %69 = vmatpush1.msra.mxu0 0.0
  %70 = vmatprep.subr.mxu0 0.0
  %71 = vmatpush1.msra.mxu0 0.0
  %72 = vmatprep.subr.mxu0 0.0
  %73 = vmatpush1.msra.mxu0 %v42
  %74 = vmatprep.subr.mxu0 0.0
  %75 = vmatpush1.msra.mxu0 %v27
  %76 = vmatprep.subr.mxu0 0.0
  %77 = vmatpush2.msra.mxu0 0.0
  %78 = vmatprep.subr.mxu0 0.0
  %79 = vmatpush2.msra.mxu0 0.0
  %80 = vmatprep.subr.mxu0 0.0
  %81 = vmatpush2.msra.mxu0 0.0
  %82 = vmatprep.subr.mxu0 0.0
  %83 = vmatpush2.msra.mxu0 0.0
  %84 = vmatprep.subr.mxu0 0.0
  %85 = vmatpush2.msra.mxu0 0.0
  %86 = vmatprep.subr.mxu0 0.0
  %87 = vmatpush2.msra.mxu0 0.0
  %88 = vmatprep.subr.mxu0 0.0
  %89 = vmatpush2.msra.mxu0 0.0
  %90 = vmatprep.subr.mxu0 0.0
  %91 = vmatpush2.msra.mxu0 0.0
  %92 = vmatprep.subr.mxu0 0.0
  %93 = vmatpush2.msra.mxu0 0.0
  %94 = vmatprep.subr.mxu0 0.0
  %95 = vmatpush2.msra.mxu0 0.0
  %96 = vmatprep.subr.mxu0 0.0
  %97 = vmatpush2.msra.mxu0 0.0
  %98 = vmatprep.subr.mxu0 0.0
  %99 = vmatpush2.msra.mxu0 0.0
  %100 = vmatprep.subr.mxu0 0.0
  %101 = vmatpush2.msra.mxu0 0.0
  %102 = vmatprep.subr.mxu0 0.0
  %103 = vmatpush2.msra.mxu0 0.0
  %104 = vmatprep.subr.mxu0 0.0
  %105 = vmatpush2.msra.mxu0 0.0
  %106 = vmatprep.subr.mxu0 0.0
  %107 = vmatpush2.msra.mxu0 0.0
  %108 = vmatprep.mubr.f32.mxu0 0.0
  %109 = vmatmul.mubr.f32.gmra.mxu0 %v38
  %v110 = vpop.f32.mrf.mxu0
  %v111 = vadd.f32 %v34, %v110
  %v112 = vpop.f32.mrf.mxu0
  %113 = vdwg.mxu0
  %v114 = vmax.f32 %v111, 0.0
  %v115 = vld [vmem:[%s3] sm:$0xff]
  %v116 = vld [vmem:[%s3 + $0x8] sm:$0xff]
  %v117 = vld [vmem:[%s3 + $0x10] sm:$0xff]
  %v118 = vld [vmem:[%s3 + $0x18] sm:$0xff]
  %v119 = vld [vmem:[%s3 + $0x20] sm:$0xff]
  %v120 = vld [vmem:[%s3 + $0x28] sm:$0xff]
  %v121 = vld [vmem:[%s3 + $0x30] sm:$0xff]
  %v122 = vld [vmem:[%s3 + $0x38] sm:$0xff]
  %v123 = vld [vmem:[%s3 + $0x40] sm:$0xff]
  %v124 = vld [vmem:[%s3 + $0x48] sm:$0xff]
  %v125 = vld [vmem:[%s3 + $0x50] sm:$0xff]
  %v126 = vld [vmem:[%s3 + $0x58] sm:$0xff]
  %v127 = vld [vmem:[%s3 + $0x60] sm:$0xff]
  %v128 = vld [vmem:[%s3 + $0x68] sm:$0xff]
  %v129 = vld [vmem:[%s3 + $0x70] sm:$0xff]
  %v130 = vld [vmem:[%s3 + $0x78] sm:$0xff]
  %v131 = vld [vmem:[%s4] sm:$0x1]
  %v133 = vlaneseq
  %v134 = vshrl.u32 %v133, 7
  %v135 = vsub.s32 0, %v134
  %v136 = vrot.slane %v131, %v135
  %138 = vmatprep.subr.mxu0 0.0
  %139 = vmatpush1.msra.mxu0 %v130
  %140 = vmatprep.subr.mxu0 0.0
  %141 = vmatpush1.msra.mxu0 %v129
  %142 = vmatprep.subr.mxu0 0.0
  %143 = vmatpush1.msra.mxu0 %v128
  %144 = vmatprep.subr.mxu0 0.0
  %145 = vmatpush1.msra.mxu0 %v127
  %146 = vmatprep.subr.mxu0 0.0
  %147 = vmatpush1.msra.mxu0 %v126
  %148 = vmatprep.subr.mxu0 0.0
  %149 = vmatpush1.msra.mxu0 %v125
  %150 = vmatprep.subr.mxu0 0.0
  %151 = vmatpush1.msra.mxu0 %v124
  %152 = vmatprep.subr.mxu0 0.0
  %153 = vmatpush1.msra.mxu0 %v123
  %154 = vmatprep.subr.mxu0 0.0
  %155 = vmatpush1.msra.mxu0 %v122
  %156 = vmatprep.subr.mxu0 0.0
  %157 = vmatpush1.msra.mxu0 %v121
  %158 = vmatprep.subr.mxu0 0.0
  %159 = vmatpush1.msra.mxu0 %v120
  %160 = vmatprep.subr.mxu0 0.0
  %161 = vmatpush1.msra.mxu0 %v119
  %162 = vmatprep.subr.mxu0 0.0
  %163 = vmatpush1.msra.mxu0 %v118
  %164 = vmatprep.subr.mxu0 0.0
  %165 = vmatpush1.msra.mxu0 %v117
  %166 = vmatprep.subr.mxu0 0.0
  %167 = vmatpush1.msra.mxu0 %v116
  %168 = vmatprep.subr.mxu0 0.0
  %169 = vmatpush1.msra.mxu0 %v115
  %170 = vmatprep.subr.mxu0 0.0
  %171 = vmatpush2.msra.mxu0 0.0
  %172 = vmatprep.subr.mxu0 0.0
  %173 = vmatpush2.msra.mxu0 0.0
  %174 = vmatprep.subr.mxu0 0.0
  %175 = vmatpush2.msra.mxu0 0.0
  %176 = vmatprep.subr.mxu0 0.0
  %177 = vmatpush2.msra.mxu0 0.0
  %178 = vmatprep.subr.mxu0 0.0
  %179 = vmatpush2.msra.mxu0 0.0
  %180 = vmatprep.subr.mxu0 0.0
  %181 = vmatpush2.msra.mxu0 0.0
  %182 = vmatprep.subr.mxu0 0.0
  %183 = vmatpush2.msra.mxu0 0.0
  %184 = vmatprep.subr.mxu0 0.0
  %185 = vmatpush2.msra.mxu0 0.0
  %186 = vmatprep.subr.mxu0 0.0
  %187 = vmatpush2.msra.mxu0 0.0
  %188 = vmatprep.subr.mxu0 0.0
  %189 = vmatpush2.msra.mxu0 0.0
  %190 = vmatprep.subr.mxu0 0.0
  %191 = vmatpush2.msra.mxu0 0.0
  %192 = vmatprep.subr.mxu0 0.0
  %193 = vmatpush2.msra.mxu0 0.0
  %194 = vmatprep.subr.mxu0 0.0
  %195 = vmatpush2.msra.mxu0 0.0
  %196 = vmatprep.subr.mxu0 0.0
  %197 = vmatpush2.msra.mxu0 0.0
  %198 = vmatprep.subr.mxu0 0.0
  %199 = vmatpush2.msra.mxu0 0.0
  %200 = vmatprep.subr.mxu0 0.0
  %201 = vmatpush2.msra.mxu0 0.0
  %202 = vmatprep.mubr.f32.mxu0 0.0
  %203 = vmatmul.mubr.f32.gmra.mxu0 %v114
  %v204 = vpop.f32.mrf.mxu0
  %v205 = vadd.f32 %v136, %v204
  %v206 = vpop.f32.mrf.mxu0
  %207 = vdwg.mxu0
  %v208 = vmax.f32 %v205, 0.0
  %v209 = vld [vmem:[%s5] sm:$0xff]
  %v210 = vld [vmem:[%s5 + $0x8] sm:$0xff]
  %v211 = vld [vmem:[%s6] sm:$0x1]
  %v213 = vlaneseq
  %v214 = vshrl.u32 %v213, 7
  %v215 = vsub.s32 0, %v214
  %v216 = vrot.slane %v211, %v215
  %vm218 = vcmask 130048
  %v220 = vsel %vm218, %v208, 0
  %222 = vmatprep.subr.mxu0 0.0
  %223 = vmatpush1.msra.mxu0 0.0
  %224 = vmatprep.subr.mxu0 0.0
  %225 = vmatpush1.msra.mxu0 0.0
  %226 = vmatprep.subr.mxu0 0.0
  %227 = vmatpush1.msra.mxu0 0.0
  %228 = vmatprep.subr.mxu0 0.0
  %229 = vmatpush1.msra.mxu0 0.0
  %230 = vmatprep.subr.mxu0 0.0
  %231 = vmatpush1.msra.mxu0 0.0
  %232 = vmatprep.subr.mxu0 0.0
  %233 = vmatpush1.msra.mxu0 0.0
  %234 = vmatprep.subr.mxu0 0.0
  %235 = vmatpush1.msra.mxu0 0.0
  %236 = vmatprep.subr.mxu0 0.0
  %237 = vmatpush1.msra.mxu0 0.0
  %238 = vmatprep.subr.mxu0 0.0
  %239 = vmatpush1.msra.mxu0 0.0
  %240 = vmatprep.subr.mxu0 0.0
  %241 = vmatpush1.msra.mxu0 0.0
  %242 = vmatprep.subr.mxu0 0.0
  %243 = vmatpush1.msra.mxu0 0.0
  %244 = vmatprep.subr.mxu0 0.0
  %245 = vmatpush1.msra.mxu0 0.0
  %246 = vmatprep.subr.mxu0 0.0
  %247 = vmatpush1.msra.mxu0 0.0
  %248 = vmatprep.subr.mxu0 0.0
  %249 = vmatpush1.msra.mxu0 0.0
  %250 = vmatprep.subr.mxu0 0.0
  %251 = vmatpush1.msra.mxu0 %v210
  %252 = vmatprep.subr.mxu0 0.0
  %253 = vmatpush1.msra.mxu0 %v209
  %254 = vmatprep.subr.mxu0 0.0
  %255 = vmatpush2.msra.mxu0 0.0
  %256 = vmatprep.subr.mxu0 0.0
  %257 = vmatpush2.msra.mxu0 0.0
  %258 = vmatprep.subr.mxu0 0.0
  %259 = vmatpush2.msra.mxu0 0.0
  %260 = vmatprep.subr.mxu0 0.0
  %261 = vmatpush2.msra.mxu0 0.0
  %262 = vmatprep.subr.mxu0 0.0
  %263 = vmatpush2.msra.mxu0 0.0
  %264 = vmatprep.subr.mxu0 0.0
  %265 = vmatpush2.msra.mxu0 0.0
  %266 = vmatprep.subr.mxu0 0.0
  %267 = vmatpush2.msra.mxu0 0.0
  %268 = vmatprep.subr.mxu0 0.0
  %269 = vmatpush2.msra.mxu0 0.0
  %270 = vmatprep.subr.mxu0 0.0
  %271 = vmatpush2.msra.mxu0 0.0
  %272 = vmatprep.subr.mxu0 0.0
  %273 = vmatpush2.msra.mxu0 0.0
  %274 = vmatprep.subr.mxu0 0.0
  %275 = vmatpush2.msra.mxu0 0.0
  %276 = vmatprep.subr.mxu0 0.0
  %277 = vmatpush2.msra.mxu0 0.0
  %278 = vmatprep.subr.mxu0 0.0
  %279 = vmatpush2.msra.mxu0 0.0
  %280 = vmatprep.subr.mxu0 0.0
  %281 = vmatpush2.msra.mxu0 0.0
  %282 = vmatprep.subr.mxu0 0.0
  %283 = vmatpush2.msra.mxu0 0.0
  %284 = vmatprep.subr.mxu0 0.0
  %285 = vmatpush2.msra.mxu0 0.0
  %286 = vmatprep.mubr.f32.mxu0 0.0
  %287 = vmatmul.mubr.f32.gmra.mxu0 %v220
  %v288 = vpop.f32.mrf.mxu0
  %v289 = vadd.f32 %v216, %v288
  %v290 = vpop.f32.mrf.mxu0
  %291 = vdwg.mxu0
  %v292 = vmax.f32 %v289, 0.0
  %293 = vst.msk [vmem:[%s7] sm:$0xff] %vm218, %v292
  // Predicated region
  $region30: #{landmark_forward.1} parent=0 // pred_check
    _
  $region31: #{landmark_forward.1} parent=0 // pred_check_branch
    %295 = sbr.rel (0) target = $region33
  $region32: #{landmark_forward.1} parent=0 // pred_region
    _
  $region33: #{landmark_forward.1} parent=0 // pred_fallthru
    _
  // Predicated region
  $region34: #{landmark_forward.1} parent=0 // pred_check
    _
  $region35: #{landmark_forward.1} parent=0 // pred_check_branch
    %297 = sbr.rel (0) target = $region37
  $region36: #{landmark_forward.1} parent=0 // pred_region
    _
  $region37: #{landmark_forward.1} parent=0 // pred_fallthru
    _

</llo_original>
